<compile_context>
chip_gen: v7x
topology: tpu7x:2x2x1
jax: 0.10.0
libtpu: 0.0.40
codegen_flags: <defaults>
</compile_context>

<pallas_src>
import functools

import jax
import jax.numpy as jnp
from jax import lax
from jax.experimental import pallas as pl
from jax.experimental.pallas import tpu as pltpu

EPS = 1e-5
LANES = 128


def _normalize(x, g, b, fan_in):
    """One-pass LayerNorm of f32 x (last dim == fan_in) with affine g, b."""
    inv_n = 1.0 / float(fan_in)
    mean = jnp.sum(x, axis=-1, keepdims=True) * inv_n
    sumsq = jnp.sum(x * x, axis=-1, keepdims=True) * inv_n
    # Clamp: one-pass E[x^2] - mean^2 can go slightly negative from rounding.
    var = jnp.maximum(sumsq - mean * mean, 0.0)
    inv = lax.rsqrt(var + EPS)
    return (x - mean) * inv * g + b


def _layernorm_kernel(x_ref, gb_ref, o_ref, *, fan_in):
    # x_ref: (tile_rows, fan_in); gb_ref: (2, fan_in) f32 (gamma row 0, beta row 1).
    x = x_ref[...].astype(jnp.float32)
    y = _normalize(x, gb_ref[0:1, :], gb_ref[1:2, :], fan_in)
    o_ref[...] = y.astype(o_ref.dtype)


def _layernorm_packed_kernel(x_ref, gb_ref, o_ref, *, fan_in, k):
    # Lane-dense packed layout: each block row holds k logical rows of width
    # fan_in (k * fan_in == 128).  DMAs move dense 128-lane rows; stats are
    # computed per lane segment with static slices (small unroll, k <= 16).
    x = x_ref[...].astype(jnp.float32)          # (tile_rows, 128)
    g = gb_ref[0:1, :]                          # (1, fan_in), loop-invariant
    b = gb_ref[1:2, :]
    for j in range(k):
        lo, hi = j * fan_in, (j + 1) * fan_in
        y = _normalize(x[:, lo:hi], g, b, fan_in)
        o_ref[:, lo:hi] = y.astype(o_ref.dtype)


def _vmem_budget_bytes():
    """~75% of per-core VMEM (v5e/v6e: 128 MiB, v7x: 64 MiB), leaving headroom
    for Mosaic internal scratch / semaphores."""
    try:
        cap = int(pltpu.get_tpu_info().vmem_capacity_bytes)
    except Exception:
        cap = 64 << 20                          # conservative (v7x-sized) fallback
    return (cap * 3) // 4


def _per_row_vmem_bytes(width, dtype_bytes):
    # Per resident row: 2x double-buffered input + 2x output tiles in x dtype,
    # plus ~3 tile-sized f32 temporaries for the normalize math.
    return width * (4 * dtype_bytes + 3 * 4)


def _pick_tile_rows(rows, width, dtype_bytes, vmem_budget,
                    target_tile_bytes=8 << 20):
    """Largest sublane-aligned row tile that is ~target_tile_bytes of x and
    keeps the double-buffered pipeline + f32 temporaries inside the budget."""
    sublane = {1: 32, 2: 16, 4: 8}.get(dtype_bytes, 8)
    row_bytes = width * dtype_bytes
    per_row_vmem = _per_row_vmem_bytes(width, dtype_bytes)
    # TODO(synk): very large fan_in (VMEM budget < one sublane group of rows)
    # would need a feature-axis-tiled two-pass kernel; not implemented.
    tr = min(target_tile_bytes // max(1, row_bytes),
             max(1, vmem_budget // per_row_vmem))
    tr = max(sublane, (tr // sublane) * sublane)
    if tr >= rows:
        # Whole problem fits in one tile.  Split in two when it is big enough
        # to benefit from pipelining / v7x megacore sharding of the row axis.
        if rows >= 2 * sublane and rows * row_bytes >= (1 << 20):
            half = (rows + 1) // 2
            tr = ((half + sublane - 1) // sublane) * sublane
            return min(tr, rows)
        return rows
    return tr


def layer_norm(x, gamma, beta, *, tile_rows=None, target_tile_bytes=8 << 20):
    """LayerNorm over the last axis of x using a Pallas TPU kernel.

    x:     (..., fan_in)
    gamma: (fan_in,)
    beta:  (fan_in,)
    """
    fan_in = x.shape[-1]
    orig_shape = x.shape
    x2 = x.reshape(-1, fan_in)                  # contiguous reshape, no copy
    rows = x2.shape[0]
    dtype_bytes = jnp.dtype(x.dtype).itemsize

    # Lane-dense packing for small fan_in (e.g. 32): pack k rows per 128-lane
    # row so DMAs and stores are unmasked full-lane vectors.
    pack = (fan_in < LANES) and (LANES % fan_in == 0) and (fan_in >= 8)
    k = LANES // fan_in if pack else 1
    # TODO(synk): fan_in >= 128 and not a multiple of 128 (or fan_in < 8) still
    # uses lane-masked stores; a padded-lane layout with masked stats would fix it.

    pad_rows = 0
    if pack:
        pad_rows = (-rows) % k
        if pad_rows:
            x2 = jnp.pad(x2, ((0, pad_rows), (0, 0)))
        xk = x2.reshape((rows + pad_rows) // k, LANES)
    else:
        xk = x2
    krows, width = xk.shape

    # gamma/beta fused into one loop-invariant f32 operand (single DMA).
    gb = jnp.stack([gamma.astype(jnp.float32).reshape(fan_in),
                    beta.astype(jnp.float32).reshape(fan_in)])    # (2, fan_in)

    budget = _vmem_budget_bytes()
    if tile_rows is None:
        tile_rows = _pick_tile_rows(krows, width, dtype_bytes, budget,
                                    target_tile_bytes)
    tile_rows = min(tile_rows, krows)
    grid = pl.cdiv(krows, tile_rows)            # ragged final block is masked

    vmem_needed = tile_rows * _per_row_vmem_bytes(width, dtype_bytes) \
        + 8 * fan_in * 4
    vmem_limit = int(min(budget, max(32 << 20, (vmem_needed * 5) // 4)))

    if pack:
        kernel = functools.partial(_layernorm_packed_kernel, fan_in=fan_in, k=k)
    else:
        kernel = functools.partial(_layernorm_kernel, fan_in=fan_in)

    out = pl.pallas_call(
        kernel,
        out_shape=jax.ShapeDtypeStruct((krows, width), x.dtype),
        grid_spec=pltpu.PrefetchScalarGridSpec(
            num_scalar_prefetch=0,
            grid=(grid,),
            in_specs=[
                pl.BlockSpec((tile_rows, width), lambda i: (i, 0)),
                pl.BlockSpec((2, fan_in), lambda i: (0, 0)),
            ],
            out_specs=pl.BlockSpec((tile_rows, width), lambda i: (i, 0)),
        ),
        compiler_params=pltpu.CompilerParams(
            dimension_semantics=("parallel",),
            vmem_limit_bytes=vmem_limit,
        ),
    )(xk, gb)

    if pack:
        out = out.reshape(krows * k, fan_in)
        if pad_rows:
            out = out[:rows]
    return out.reshape(orig_shape)


def _reference(x, gamma, beta):
    mean = jnp.mean(x.astype(jnp.float32), axis=-1, keepdims=True)
    var = jnp.mean((x.astype(jnp.float32) - mean) ** 2, axis=-1, keepdims=True)
    return ((x - mean) / jnp.sqrt(var + EPS) * gamma + beta).astype(x.dtype)


if __name__ == "__main__":
    key = jax.random.PRNGKey(0)
    batch, seq, hidden = 2, 8, 32               # fan_in = hidden

    # nn.LayerNorm default init: weight = ones, bias = zeros.
    gamma = jnp.ones((hidden,), dtype=jnp.float32)
    beta = jnp.zeros((hidden,), dtype=jnp.float32)

    # Main demo (packed lane-dense path, fan_in=32).
    x = jax.random.normal(key, (batch, seq, hidden), dtype=jnp.float32)
    y = jax.block_until_ready(layer_norm(x, gamma, beta))
    ref = _reference(x, gamma, beta)
    assert jnp.allclose(y, ref, atol=1e-5, rtol=1e-5), "mismatch (packed path)"

    # Ragged-grid test on the plain path (rows % tile_rows != 0, fan_in=128).
    k2 = jax.random.PRNGKey(1)
    x3 = jax.random.normal(k2, (5, 8, 128), dtype=jnp.float32)
    g3 = jnp.ones((128,), dtype=jnp.float32)
    b3 = jnp.zeros((128,), dtype=jnp.float32)
    y3 = jax.block_until_ready(layer_norm(x3, g3, b3, tile_rows=16))
    assert jnp.allclose(y3, _reference(x3, g3, b3), atol=1e-5, rtol=1e-5), \
        "mismatch (plain ragged path)"

    # Ragged + row-padding test on the packed path (rows not a multiple of k).
    k3 = jax.random.PRNGKey(2)
    x4 = jax.random.normal(k3, (37, hidden), dtype=jnp.float32)
    y4 = jax.block_until_ready(layer_norm(x4, gamma, beta, tile_rows=8))
    assert jnp.allclose(y4, _reference(x4, gamma, beta), atol=1e-5, rtol=1e-5), \
        "mismatch (packed ragged path)"

    print("KERNEL_OK")
</pallas_src>

<mosaic_0001>
module attributes {stable_mosaic.version = 11 : i64} {
  func.func @_layernorm_packed_kernel(%arg0: i32, %arg1: memref<4x128xf32, #tpu.memory_space<vmem>>, %arg2: memref<2x32xf32, #tpu.memory_space<vmem>>, %arg3: memref<4x128xf32, #tpu.memory_space<vmem>>) attributes {dimension_semantics = [#tpu.dimension_semantics<parallel>], iteration_bounds = array<i64: 1>, scalar_prefetch = 0 : i64, scratch_operands = 0 : i64, tpu.core_type = #tpu.core_type<tc>, window_params = [{transform_indices = @transform_0, window_bounds = array<i64: 4, 128>}, {pipeline_mode = #tpu.pipeline_mode<synchronous>, transform_indices = @transform_1, window_bounds = array<i64: 2, 32>}, {transform_indices = @transform_2, window_bounds = array<i64: 4, 128>}]} {
    %c0 = arith.constant 0 : index
    %c0_0 = arith.constant 0 : index
    %0 = vector.load %arg1[%c0, %c0_0] : memref<4x128xf32, #tpu.memory_space<vmem>>, vector<4x128xf32>
    %c0_1 = arith.constant 0 : index
    %c0_2 = arith.constant 0 : index
    %1 = vector.load %arg2[%c0_1, %c0_2] : memref<2x32xf32, #tpu.memory_space<vmem>>, vector<1x32xf32>
    %c1 = arith.constant 1 : index
    %c0_3 = arith.constant 0 : index
    %2 = vector.load %arg2[%c1, %c0_3] : memref<2x32xf32, #tpu.memory_space<vmem>>, vector<1x32xf32>
    %3 = vector.extract_strided_slice %0 {offsets = [0, 0], sizes = [4, 32], strides = [1, 1]} : vector<4x128xf32> to vector<4x32xf32>
    %cst = arith.constant dense<0.000000e+00> : vector<4xf32>
    %4 = vector.multi_reduction <add>, %3, %cst [1] : vector<4x32xf32> to vector<4xf32>
    %5 = vector.shape_cast %4 : vector<4xf32> to vector<4x1xf32>
    %cst_4 = arith.constant 3.125000e-02 : f32
    %6 = vector.broadcast %cst_4 : f32 to vector<4x1xf32>
    %7 = arith.mulf %5, %6 : vector<4x1xf32>
    %8 = arith.mulf %3, %3 : vector<4x32xf32>
    %cst_5 = arith.constant dense<0.000000e+00> : vector<4xf32>
    %9 = vector.multi_reduction <add>, %8, %cst_5 [1] : vector<4x32xf32> to vector<4xf32>
    %10 = vector.shape_cast %9 : vector<4xf32> to vector<4x1xf32>
    %cst_6 = arith.constant 3.125000e-02 : f32
    %11 = vector.broadcast %cst_6 : f32 to vector<4x1xf32>
    %12 = arith.mulf %10, %11 : vector<4x1xf32>
    %13 = arith.mulf %7, %7 : vector<4x1xf32>
    %14 = arith.subf %12, %13 : vector<4x1xf32>
    %cst_7 = arith.constant 0.000000e+00 : f32
    %15 = vector.broadcast %cst_7 : f32 to vector<4x1xf32>
    %16 = arith.maximumf %14, %15 : vector<4x1xf32>
    %cst_8 = arith.constant 9.99999974E-6 : f32
    %17 = vector.broadcast %cst_8 : f32 to vector<4x1xf32>
    %18 = arith.addf %16, %17 : vector<4x1xf32>
    %19 = math.rsqrt %18 : vector<4x1xf32>
    %20 = vector.broadcast %7 : vector<4x1xf32> to vector<4x32xf32>
    %21 = arith.subf %3, %20 : vector<4x32xf32>
    %22 = vector.broadcast %19 : vector<4x1xf32> to vector<4x32xf32>
    %23 = arith.mulf %21, %22 : vector<4x32xf32>
    %24 = vector.broadcast %1 : vector<1x32xf32> to vector<4x32xf32>
    %25 = arith.mulf %23, %24 : vector<4x32xf32>
    %26 = vector.broadcast %2 : vector<1x32xf32> to vector<4x32xf32>
    %27 = arith.addf %25, %26 : vector<4x32xf32>
    %c0_9 = arith.constant 0 : index
    %c0_10 = arith.constant 0 : index
    %28 = vector.load %arg3[%c0_9, %c0_10] : memref<4x128xf32, #tpu.memory_space<vmem>>, vector<4x32xf32>
    tpu.vector_store %arg3[%c0_9, %c0_10], %27 {strides = array<i32>} : memref<4x128xf32, #tpu.memory_space<vmem>>, vector<4x32xf32>,
    %29 = vector.extract_strided_slice %0 {offsets = [0, 32], sizes = [4, 32], strides = [1, 1]} : vector<4x128xf32> to vector<4x32xf32>
    %cst_11 = arith.constant dense<0.000000e+00> : vector<4xf32>
    %30 = vector.multi_reduction <add>, %29, %cst_11 [1] : vector<4x32xf32> to vector<4xf32>
    %31 = vector.shape_cast %30 : vector<4xf32> to vector<4x1xf32>
    %cst_12 = arith.constant 3.125000e-02 : f32
    %32 = vector.broadcast %cst_12 : f32 to vector<4x1xf32>
    %33 = arith.mulf %31, %32 : vector<4x1xf32>
    %34 = arith.mulf %29, %29 : vector<4x32xf32>
    %cst_13 = arith.constant dense<0.000000e+00> : vector<4xf32>
    %35 = vector.multi_reduction <add>, %34, %cst_13 [1] : vector<4x32xf32> to vector<4xf32>
    %36 = vector.shape_cast %35 : vector<4xf32> to vector<4x1xf32>
    %cst_14 = arith.constant 3.125000e-02 : f32
    %37 = vector.broadcast %cst_14 : f32 to vector<4x1xf32>
    %38 = arith.mulf %36, %37 : vector<4x1xf32>
    %39 = arith.mulf %33, %33 : vector<4x1xf32>
    %40 = arith.subf %38, %39 : vector<4x1xf32>
    %cst_15 = arith.constant 0.000000e+00 : f32
    %41 = vector.broadcast %cst_15 : f32 to vector<4x1xf32>
    %42 = arith.maximumf %40, %41 : vector<4x1xf32>
    %cst_16 = arith.constant 9.99999974E-6 : f32
    %43 = vector.broadcast %cst_16 : f32 to vector<4x1xf32>
    %44 = arith.addf %42, %43 : vector<4x1xf32>
    %45 = math.rsqrt %44 : vector<4x1xf32>
    %46 = vector.broadcast %33 : vector<4x1xf32> to vector<4x32xf32>
    %47 = arith.subf %29, %46 : vector<4x32xf32>
    %48 = vector.broadcast %45 : vector<4x1xf32> to vector<4x32xf32>
    %49 = arith.mulf %47, %48 : vector<4x32xf32>
    %50 = vector.broadcast %1 : vector<1x32xf32> to vector<4x32xf32>
    %51 = arith.mulf %49, %50 : vector<4x32xf32>
    %52 = vector.broadcast %2 : vector<1x32xf32> to vector<4x32xf32>
    %53 = arith.addf %51, %52 : vector<4x32xf32>
    %c0_17 = arith.constant 0 : index
    %c32 = arith.constant 32 : index
    %54 = vector.load %arg3[%c0_17, %c32] : memref<4x128xf32, #tpu.memory_space<vmem>>, vector<4x32xf32>
    tpu.vector_store %arg3[%c0_17, %c32], %53 {strides = array<i32>} : memref<4x128xf32, #tpu.memory_space<vmem>>, vector<4x32xf32>,
    %55 = vector.extract_strided_slice %0 {offsets = [0, 64], sizes = [4, 32], strides = [1, 1]} : vector<4x128xf32> to vector<4x32xf32>
    %cst_18 = arith.constant dense<0.000000e+00> : vector<4xf32>
    %56 = vector.multi_reduction <add>, %55, %cst_18 [1] : vector<4x32xf32> to vector<4xf32>
    %57 = vector.shape_cast %56 : vector<4xf32> to vector<4x1xf32>
    %cst_19 = arith.constant 3.125000e-02 : f32
    %58 = vector.broadcast %cst_19 : f32 to vector<4x1xf32>
    %59 = arith.mulf %57, %58 : vector<4x1xf32>
    %60 = arith.mulf %55, %55 : vector<4x32xf32>
    %cst_20 = arith.constant dense<0.000000e+00> : vector<4xf32>
    %61 = vector.multi_reduction <add>, %60, %cst_20 [1] : vector<4x32xf32> to vector<4xf32>
    %62 = vector.shape_cast %61 : vector<4xf32> to vector<4x1xf32>
    %cst_21 = arith.constant 3.125000e-02 : f32
    %63 = vector.broadcast %cst_21 : f32 to vector<4x1xf32>
    %64 = arith.mulf %62, %63 : vector<4x1xf32>
    %65 = arith.mulf %59, %59 : vector<4x1xf32>
    %66 = arith.subf %64, %65 : vector<4x1xf32>
    %cst_22 = arith.constant 0.000000e+00 : f32
    %67 = vector.broadcast %cst_22 : f32 to vector<4x1xf32>
    %68 = arith.maximumf %66, %67 : vector<4x1xf32>
    %cst_23 = arith.constant 9.99999974E-6 : f32
    %69 = vector.broadcast %cst_23 : f32 to vector<4x1xf32>
    %70 = arith.addf %68, %69 : vector<4x1xf32>
    %71 = math.rsqrt %70 : vector<4x1xf32>
    %72 = vector.broadcast %59 : vector<4x1xf32> to vector<4x32xf32>
    %73 = arith.subf %55, %72 : vector<4x32xf32>
    %74 = vector.broadcast %71 : vector<4x1xf32> to vector<4x32xf32>
    %75 = arith.mulf %73, %74 : vector<4x32xf32>
    %76 = vector.broadcast %1 : vector<1x32xf32> to vector<4x32xf32>
    %77 = arith.mulf %75, %76 : vector<4x32xf32>
    %78 = vector.broadcast %2 : vector<1x32xf32> to vector<4x32xf32>
    %79 = arith.addf %77, %78 : vector<4x32xf32>
    %c0_24 = arith.constant 0 : index
    %c64 = arith.constant 64 : index
    %80 = vector.load %arg3[%c0_24, %c64] : memref<4x128xf32, #tpu.memory_space<vmem>>, vector<4x32xf32>
    tpu.vector_store %arg3[%c0_24, %c64], %79 {strides = array<i32>} : memref<4x128xf32, #tpu.memory_space<vmem>>, vector<4x32xf32>,
    %81 = vector.extract_strided_slice %0 {offsets = [0, 96], sizes = [4, 32], strides = [1, 1]} : vector<4x128xf32> to vector<4x32xf32>
    %cst_25 = arith.constant dense<0.000000e+00> : vector<4xf32>
    %82 = vector.multi_reduction <add>, %81, %cst_25 [1] : vector<4x32xf32> to vector<4xf32>
    %83 = vector.shape_cast %82 : vector<4xf32> to vector<4x1xf32>
    %cst_26 = arith.constant 3.125000e-02 : f32
    %84 = vector.broadcast %cst_26 : f32 to vector<4x1xf32>
    %85 = arith.mulf %83, %84 : vector<4x1xf32>
    %86 = arith.mulf %81, %81 : vector<4x32xf32>
    %cst_27 = arith.constant dense<0.000000e+00> : vector<4xf32>
    %87 = vector.multi_reduction <add>, %86, %cst_27 [1] : vector<4x32xf32> to vector<4xf32>
    %88 = vector.shape_cast %87 : vector<4xf32> to vector<4x1xf32>
    %cst_28 = arith.constant 3.125000e-02 : f32
    %89 = vector.broadcast %cst_28 : f32 to vector<4x1xf32>
    %90 = arith.mulf %88, %89 : vector<4x1xf32>
    %91 = arith.mulf %85, %85 : vector<4x1xf32>
    %92 = arith.subf %90, %91 : vector<4x1xf32>
    %cst_29 = arith.constant 0.000000e+00 : f32
    %93 = vector.broadcast %cst_29 : f32 to vector<4x1xf32>
    %94 = arith.maximumf %92, %93 : vector<4x1xf32>
    %cst_30 = arith.constant 9.99999974E-6 : f32
    %95 = vector.broadcast %cst_30 : f32 to vector<4x1xf32>
    %96 = arith.addf %94, %95 : vector<4x1xf32>
    %97 = math.rsqrt %96 : vector<4x1xf32>
    %98 = vector.broadcast %85 : vector<4x1xf32> to vector<4x32xf32>
    %99 = arith.subf %81, %98 : vector<4x32xf32>
    %100 = vector.broadcast %97 : vector<4x1xf32> to vector<4x32xf32>
    %101 = arith.mulf %99, %100 : vector<4x32xf32>
    %102 = vector.broadcast %1 : vector<1x32xf32> to vector<4x32xf32>
    %103 = arith.mulf %101, %102 : vector<4x32xf32>
    %104 = vector.broadcast %2 : vector<1x32xf32> to vector<4x32xf32>
    %105 = arith.addf %103, %104 : vector<4x32xf32>
    %c0_31 = arith.constant 0 : index
    %c96 = arith.constant 96 : index
    %106 = vector.load %arg3[%c0_31, %c96] : memref<4x128xf32, #tpu.memory_space<vmem>>, vector<4x32xf32>
    tpu.vector_store %arg3[%c0_31, %c96], %105 {strides = array<i32>} : memref<4x128xf32, #tpu.memory_space<vmem>>, vector<4x32xf32>,
    return
  }
  func.func @transform_0(%arg0: i32) -> (i32, i32) {
    %c0_i32 = arith.constant 0 : i32
    %c0_i32_0 = arith.constant 0 : i32
    return %arg0, %c0_i32 : i32, i32
  }
  func.func @transform_1(%arg0: i32) -> (i32, i32) {
    %c0_i32 = arith.constant 0 : i32
    %c0_i32_0 = arith.constant 0 : i32
    %c0_i32_1 = arith.constant 0 : i32
    return %c0_i32, %c0_i32_0 : i32, i32
  }
  func.func @transform_2(%arg0: i32) -> (i32, i32) {
    %c0_i32 = arith.constant 0 : i32
    %c0_i32_0 = arith.constant 0 : i32
    return %arg0, %c0_i32 : i32, i32
  }
}

</mosaic_0001>

<llo_original>
// kernel: tpu_custom_call.1
$region0: #{tpu_custom_call.1}
  #allocation0 [shape = 'u32[]', space=smem, size = 0x4, offset = 0x4, fixed_abs, tag = 'smem constant byte address 0x4 - core index']
  #allocation1 [shape = 'u32[144,128]{1,0:T(1,128)}', space=vmem, size = 0x12000, scoped, tag = 'internal scratch']
  %s0 = inlined_call_operand.hbm [shape: f32[4,128], index: 0, kind: input, shape index: {}]
  %s1 = inlined_call_operand.vmem [shape: f32[2,32], index: 1, kind: input, shape index: {}]
  %s2 = inlined_call_operand.hbm [shape: f32[4,128], index: 2, kind: output, shape index: {}]
  %s3 = sld [smem:[#allocation0]]
  $region22: #{tpu_custom_call.1} parent=0
    _
  %s5 = ssub.s32 1, %s3
  %s6 = scalar_select 0, %s5, %s3
  $region1: #{tpu_custom_call.1} parent=0
    #allocation2 [shape = 'u8[2048]{0}', space=vmem, size = 0x800, scoped, tag = 'input window, operand 0, single buffered']
    #allocation3 [shape = 's32[1]{0}', space=sflag, size = 0x4, scoped, tag = 'scoped memory for tpu_custom_call.1']
    #allocation4 [shape = 's32[1]{0}', space=sflag, size = 0x4, scoped, tag = 'scoped memory for tpu_custom_call.1']
    #allocation5 [shape = 'u8[2048]{0}', space=vmem, size = 0x800, scoped, tag = 'output window, operand 0, single buffered']
    %7 = vsyncpa [#allocation3], 0
    %8 = vsyncpa [#allocation4], 0
    // Predicated region
    $region2: #{tpu_custom_call.1} parent=1 // pred_check
      _
    $region3: #{tpu_custom_call.1} parent=1 // pred_check_branch
      %10 = sbr.rel (0) target = $region5
    $region4: #{tpu_custom_call.1} parent=1 // pred_region
      %s12 = ssub.s32 64, 64
      %13 = vsyncadd [#allocation3], %s12
      %s15 = sshll.u32 [#allocation2], 4
      %s16 = int_to_ptr.vmem [resolvable:$true] %s15
      %18 = dma.hbm_to_vmem [thread:$0]  %s0, 64, %s16, [#allocation3]
    $region5: #{tpu_custom_call.1} parent=1 // pred_fallthru
      _
    // Predicated region
    $region6: #{tpu_custom_call.1} parent=1 // pred_check
      _
    $region7: #{tpu_custom_call.1} parent=1 // pred_check_branch
      %20 = sbr.rel (0) target = $region9
    $region8: #{tpu_custom_call.1} parent=1 // pred_region
      _
    $region9: #{tpu_custom_call.1} parent=1 // pred_fallthru
      _
    // Predicated region
    $region10: #{tpu_custom_call.1} parent=1 // pred_check
      _
    $region11: #{tpu_custom_call.1} parent=1 // pred_check_branch
      %22 = sbr.rel (0) target = $region13
    $region12: #{tpu_custom_call.1} parent=1 // pred_region
      %23 = dma.done [#allocation3], 64
    $region13: #{tpu_custom_call.1} parent=1 // pred_fallthru
      _
    %v24 = vld [vmem:[#allocation2] sm:$0xf]
    %v25 = vld [vmem:[%s1] sm:$0x1]
    %v26 = vld [vmem:[%s1 + $0x1] sm:$0x1]
    %vm27 = vcmask 257024
    %v28 = vsel %vm27, %v24, 0.0
    %29 = vadd.xlane.f32.xlu0 %v28
    %v30 = vpop.xlane.xlu0 %29
    %v31 = vmul.f32 %v30, 0.03125
    %v32 = vmul.f32 %v24, %v24
    %v33 = vsel %vm27, %v32, 0.0
    %34 = vadd.xlane.f32.xlu0 %v33
    %v35 = vpop.xlane.xlu0 %34
    %v36 = vmul.f32 %v35, 0.03125
    %v37 = vmul.f32 %v31, %v31
    %v38 = vsub.f32 %v36, %v37
    %v39 = vmax.f32 %v38, 0.0
    %v40 = vadd.f32 %v39, 1e-05
    %v41 = vrsqrt.pop %v40
    %v42 = vsub.f32 %v24, %v31
    %v43 = vmul.f32 %v42, %v41
    %v44 = vlaneseq
    %v45 = vshrl.u32 %v44, 7
    %v46 = vsub.s32 0, %v45
    %v47 = vrot.slane %v25, %v46
    %v48 = vmul.f32 %v43, %v47
    %v49 = vlaneseq
    %v50 = vshrl.u32 %v49, 7
    %v51 = vsub.s32 0, %v50
    %v52 = vrot.slane %v26, %v51
    %v53 = vadd.f32 %v48, %v52
    %54 = vst.msk [vmem:[#allocation5] sm:$0xf] %vm27, %v53
    %56 = vrot.lane.b32.xlu0 %v24, 96
    %v57 = vpop.permute.xlu0 %56
    %v59 = vsel %vm27, %v57, 0.0
    %60 = vadd.xlane.f32.xlu0 %v59
    %v61 = vpop.xlane.xlu0 %60
    %v62 = vmul.f32 %v61, 0.03125
    %64 = vrot.lane.b32.xlu0 %v32, 96
    %v65 = vpop.permute.xlu0 %64
    %v67 = vsel %vm27, %v65, 0.0
    %68 = vadd.xlane.f32.xlu0 %v67
    %v69 = vpop.xlane.xlu0 %68
    %v70 = vmul.f32 %v69, 0.03125
    %v71 = vmul.f32 %v62, %v62
    %v72 = vsub.f32 %v70, %v71
    %v73 = vmax.f32 %v72, 0.0
    %v74 = vadd.f32 %v73, 1e-05
    %v75 = vrsqrt.pop %v74
    %v76 = vsub.f32 %v24, %v62
    %v77 = vmul.f32 %v76, %v75
    %79 = vrot.lane.b32.xlu0 %v47, 32
    %v80 = vpop.permute.xlu0 %79
    %v82 = vmul.f32 %v77, %v80
    %84 = vrot.lane.b32.xlu0 %v52, 32
    %v85 = vpop.permute.xlu0 %84
    %v87 = vadd.f32 %v82, %v85
    %vm88 = vcmask 519424
    %89 = vst.msk [vmem:[#allocation5] sm:$0xf] %vm88, %v87
    %90 = vrot.lane.b32.xlu0 %v24, 64
    %v91 = vpop.permute.xlu0 %90
    %v93 = vsel %vm27, %v91, 0.0
    %94 = vadd.xlane.f32.xlu0 %v93
    %v95 = vpop.xlane.xlu0 %94
    %v96 = vmul.f32 %v95, 0.03125
    %97 = vrot.lane.b32.xlu0 %v32, 64
    %v98 = vpop.permute.xlu0 %97
    %v100 = vsel %vm27, %v98, 0.0
    %101 = vadd.xlane.f32.xlu0 %v100
    %v102 = vpop.xlane.xlu0 %101
    %v103 = vmul.f32 %v102, 0.03125
    %v104 = vmul.f32 %v96, %v96
    %v105 = vsub.f32 %v103, %v104
    %v106 = vmax.f32 %v105, 0.0
    %v107 = vadd.f32 %v106, 1e-05
    %v108 = vrsqrt.pop %v107
    %v109 = vsub.f32 %v24, %v96
    %v110 = vmul.f32 %v109, %v108
    %111 = vrot.lane.b32.xlu0 %v47, 64
    %v112 = vpop.permute.xlu0 %111
    %v114 = vmul.f32 %v110, %v112
    %115 = vrot.lane.b32.xlu0 %v52, 64
    %v116 = vpop.permute.xlu0 %115
    %v118 = vadd.f32 %v114, %v116
    %vm119 = vcmask 781824
    %120 = vst.msk [vmem:[#allocation5] sm:$0xf] %vm119, %v118
    %121 = vrot.lane.b32.xlu0 %v24, 32
    %v122 = vpop.permute.xlu0 %121
    %v124 = vsel %vm27, %v122, 0.0
    %125 = vadd.xlane.f32.xlu0 %v124
    %v126 = vpop.xlane.xlu0 %125
    %v127 = vmul.f32 %v126, 0.03125
    %128 = vrot.lane.b32.xlu0 %v32, 32
    %v129 = vpop.permute.xlu0 %128
    %v131 = vsel %vm27, %v129, 0.0
    %132 = vadd.xlane.f32.xlu0 %v131
    %v133 = vpop.xlane.xlu0 %132
    %v134 = vmul.f32 %v133, 0.03125
    %v135 = vmul.f32 %v127, %v127
    %v136 = vsub.f32 %v134, %v135
    %v137 = vmax.f32 %v136, 0.0
    %v138 = vadd.f32 %v137, 1e-05
    %v139 = vrsqrt.pop %v138
    %v140 = vsub.f32 %v24, %v127
    %v141 = vmul.f32 %v140, %v139
    %142 = vrot.lane.b32.xlu0 %v47, 96
    %v143 = vpop.permute.xlu0 %142
    %v145 = vmul.f32 %v141, %v143
    %146 = vrot.lane.b32.xlu0 %v52, 96
    %v147 = vpop.permute.xlu0 %146
    %v149 = vadd.f32 %v145, %v147
    %vm150 = vcmask 1044224
    %151 = vst.msk [vmem:[#allocation5] sm:$0xf] %vm150, %v149
    // Predicated region
    $region14: #{tpu_custom_call.1} parent=1 // pred_check
      _
    $region15: #{tpu_custom_call.1} parent=1 // pred_check_branch
      %153 = sbr.rel (0) target = $region17
    $region16: #{tpu_custom_call.1} parent=1 // pred_region
      %s155 = ssub.s32 64, 64
      %156 = vsyncadd [#allocation4], %s155
      %s158 = sshll.u32 [#allocation5], 4
      %s159 = int_to_ptr.vmem [resolvable:$true] %s158
      %161 = dma.vmem_to_hbm [thread:$0]  %s159, 64, %s2, [#allocation4]
    $region17: #{tpu_custom_call.1} parent=1 // pred_fallthru
      _
    // Predicated region
    $region18: #{tpu_custom_call.1} parent=1 // pred_check
      _
    $region19: #{tpu_custom_call.1} parent=1 // pred_check_branch
      %163 = sbr.rel (0) target = $region21
    $region20: #{tpu_custom_call.1} parent=1 // pred_region
      %164 = dma.done [#allocation4], 64
    $region21: #{tpu_custom_call.1} parent=1 // pred_fallthru
      _
    %165 = vsyncpa [#allocation3], 1
    %166 = vsyncpa [#allocation4], 1

</llo_original>
